<compile_context>
chip_gen: v7x
topology: tpu7x:2x2x1
jax: 0.10.0
libtpu: 0.0.40
codegen_flags: <defaults>
</compile_context>

<pallas_src>
import jax
import jax.numpy as jnp
from jax.experimental import pallas as pl
from jax.experimental.pallas import tpu as pltpu


def _round_up(x, m):
    return ((x + m - 1) // m) * m


def _device_kind():
    try:
        return jax.devices()[0].device_kind.lower()
    except Exception:
        return ""


def _is_v7():
    kind = _device_kind()
    return ("v7" in kind) or ("7x" in kind)


def _vmem_budget_bytes():
    # ~3/4 of physical VMEM; v7x has 64 MiB per core, v5e/v6e have 128 MiB.
    try:
        phys = int(pltpu.get_tpu_info().vmem_capacity_bytes)
        return max(32 << 20, (phys * 3) // 4)
    except Exception:
        pass
    return (48 << 20) if _is_v7() else (96 << 20)


def _default_f_tile():
    # Larger K tiles amortize the ~0.35us/step grid overhead; v7x's smaller VMEM
    # gets the smaller default.
    return 4096 if _is_v7() else 8192


# ---------------------------------------------------------------------------
# Kernels
# ---------------------------------------------------------------------------

def _encode_kernel(x_ref, wenc_ref, feat_ref):
    # grid = (d_blocks, b_blocks, k_blocks); k is the contraction over F = C*H*W.
    # x_ref:    (b_tile, f_tile)   bf16 image tile
    # wenc_ref: (f_tile, d_tile)   bf16 frozen encoder projection tile
    # feat_ref: (b_tile, d_tile)   f32 image features (resident accumulator)
    k = pl.program_id(2)

    @pl.when(k == 0)
    def _init():
        feat_ref[...] = jnp.zeros_like(feat_ref)

    feat_ref[...] += jnp.dot(x_ref[...], wenc_ref[...],
                             preferred_element_type=jnp.float32)


def _head_kernel(feat_ref, wcls_ref, b_ref, out_ref):
    # feat_ref: (b_tile, D_pad) f32; wcls_ref: (D_pad, NC_pad) f32 (= torch W^T,
    # zero-padded); b_ref: (1, NC_pad) f32; out_ref: (b_tile, NC_pad) f32.
    out_ref[...] = (jnp.dot(feat_ref[...], wcls_ref[...],
                            preferred_element_type=jnp.float32) + b_ref[...])


# ---------------------------------------------------------------------------
# Parameter prep (one-time, NOT per call)
# ---------------------------------------------------------------------------

def prepare_params(w_enc, w_cls, b_cls, *, f_tile=None):
    """w_enc: (F, D) frozen encoder projection (stand-in for encode_image).
    w_cls: (D, NC) classifier weight (torch stores (NC, D); pass W^T).
    b_cls: (NC,)   classifier bias.
    """
    F, D = w_enc.shape
    assert w_cls.shape[0] == D
    NC = w_cls.shape[1]

    if f_tile is None:
        f_tile = _default_f_tile()
    f_tile = max(128, _round_up(int(f_tile), 128))
    f_tile = min(f_tile, _round_up(F, 128))
    F_pad = _round_up(F, f_tile)

    D_pad = _round_up(D, 128)      # lane-dense features / MXU N dim
    NC_pad = _round_up(NC, 128)    # lane-dense classifier columns

    # bf16 streaming of the big frozen weight (halves HBM traffic); done once.
    w_enc_p = jnp.zeros((F_pad, D_pad), dtype=jnp.bfloat16)
    w_enc_p = w_enc_p.at[:F, :D].set(w_enc.astype(jnp.bfloat16))

    w_cls_p = jnp.zeros((D_pad, NC_pad), dtype=jnp.float32)
    w_cls_p = w_cls_p.at[:D, :NC].set(w_cls.astype(jnp.float32))

    b_p = jnp.zeros((1, NC_pad), dtype=jnp.float32)
    b_p = b_p.at[0, :NC].set(b_cls.astype(jnp.float32))

    return dict(w_enc=w_enc_p, w_cls=w_cls_p, b=b_p,
                f_tile=int(f_tile), F=int(F), D=int(D), NC=int(NC))


# ---------------------------------------------------------------------------
# Forward
# ---------------------------------------------------------------------------

def sign_language_classifier_forward(images_nchw, params):
    """images_nchw: (B, C, H, W)  ->  (B, NC) float32 logits."""
    w_enc = params["w_enc"]            # (F_pad, D_pad) bf16
    w_cls = params["w_cls"]            # (D_pad, NC_pad) f32
    bias = params["b"]                 # (1, NC_pad) f32
    f_tile = params["f_tile"]
    F, D, NC = params["F"], params["D"], params["NC"]
    F_pad, D_pad = w_enc.shape
    NC_pad = w_cls.shape[1]

    B = images_nchw.shape[0]
    # bf16 activations halve the x HBM stream; pad happens in the same XLA op.
    x = images_nchw.reshape(B, -1).astype(jnp.bfloat16)
    assert x.shape[1] == F

    # Large batch tiles so W_enc is re-streamed as few times as possible.
    b_tile = min(_round_up(B, 16), 512)
    B_pad = _round_up(B, b_tile)
    if B_pad != B or F_pad != F:
        x = jnp.pad(x, ((0, B_pad - B), (0, F_pad - F)))

    num_b = B_pad // b_tile
    num_k = F_pad // f_tile
    # Megacore: with a single batch block, split the D columns of W_enc across a
    # second parallel grid entry so the second TensorCore streams the other half.
    num_d = 2 if (num_b == 1 and D_pad % 256 == 0) else 1
    d_tile = D_pad // num_d

    vmem_budget = _vmem_budget_bytes()

    # --- encoder (mem-bound streaming matmul) ---
    enc_est = (2 * b_tile * f_tile * 2        # x tiles (bf16, double-buffered)
               + 2 * f_tile * d_tile * 2      # w_enc tiles (bf16, double-buffered)
               + 2 * b_tile * d_tile * 4)     # feature output tiles (f32, resident)
    enc_vmem = int(min(vmem_budget, max(32 << 20, enc_est + (8 << 20))))

    enc_cost = pl.CostEstimate(
        flops=2 * B_pad * F_pad * D_pad,
        transcendentals=0,
        bytes_accessed=(num_b * F_pad * D_pad * 2
                        + num_d * B_pad * F_pad * 2
                        + B_pad * D_pad * 4))

    feats = pl.pallas_call(
        _encode_kernel,
        out_shape=jax.ShapeDtypeStruct((B_pad, D_pad), jnp.float32),
        grid_spec=pltpu.PrefetchScalarGridSpec(
            num_scalar_prefetch=0,
            grid=(num_d, num_b, num_k),
            in_specs=[
                pl.BlockSpec((b_tile, f_tile), lambda d, b, k: (b, k)),   # x
                pl.BlockSpec((f_tile, d_tile), lambda d, b, k: (k, d)),   # w_enc
            ],
            out_specs=pl.BlockSpec((b_tile, d_tile), lambda d, b, k: (b, d)),
        ),
        compiler_params=pltpu.CompilerParams(
            dimension_semantics=("parallel", "parallel", "arbitrary"),
            vmem_limit_bytes=enc_vmem,
        ),
        cost_estimate=enc_cost,
    )(x, w_enc)

    # --- classifier head (tiny, f32) ---
    head_est = (2 * b_tile * D_pad * 4 + 2 * D_pad * NC_pad * 4
                + 2 * NC_pad * 4 + 2 * b_tile * NC_pad * 4)
    head_vmem = int(min(vmem_budget, max(16 << 20, head_est + (4 << 20))))

    head_cost = pl.CostEstimate(
        flops=2 * B_pad * D_pad * NC_pad,
        transcendentals=0,
        bytes_accessed=(B_pad * D_pad * 4 + D_pad * NC_pad * 4
                        + NC_pad * 4 + B_pad * NC_pad * 4))

    logits = pl.pallas_call(
        _head_kernel,
        out_shape=jax.ShapeDtypeStruct((B_pad, NC_pad), jnp.float32),
        grid_spec=pltpu.PrefetchScalarGridSpec(
            num_scalar_prefetch=0,
            grid=(num_b,),
            in_specs=[
                pl.BlockSpec((b_tile, D_pad), lambda b: (b, 0)),      # features
                pl.BlockSpec((D_pad, NC_pad), lambda b: (0, 0)),      # w_cls (resident)
                pl.BlockSpec((1, NC_pad), lambda b: (0, 0)),          # bias (resident)
            ],
            out_specs=pl.BlockSpec((b_tile, NC_pad), lambda b: (b, 0)),
        ),
        compiler_params=pltpu.CompilerParams(
            dimension_semantics=("parallel",),
            vmem_limit_bytes=head_vmem,
        ),
        cost_estimate=head_cost,
    )(feats, w_cls, bias)

    return logits[:B, :NC]


# ---------------------------------------------------------------------------
# Self-test
# ---------------------------------------------------------------------------

def _reference(images, w_enc, w_cls, b_cls):
    B = images.shape[0]
    x_bf = images.reshape(B, -1).astype(jnp.bfloat16)
    feats = jnp.dot(x_bf, w_enc.astype(jnp.bfloat16),
                    preferred_element_type=jnp.float32)
    return feats @ w_cls + b_cls[None, :]


def _reference_f32(images, w_enc, w_cls, b_cls):
    B = images.shape[0]
    x32 = images.astype(jnp.float32).reshape(B, -1)
    return (x32 @ w_enc) @ w_cls + b_cls[None, :]


def _run_case(key, B, C, H, W, output_dim, num_classes, f_tile):
    k_img, k_enc, k_wc, k_bc = jax.random.split(key, 4)
    images = jax.random.normal(k_img, (B, C, H, W), dtype=jnp.float32)
    w_enc = jax.random.normal(k_enc, (C * H * W, output_dim), dtype=jnp.float32) * 0.02
    w_cls = jax.random.normal(k_wc, (output_dim, num_classes), dtype=jnp.float32) * 0.02
    b_cls = jax.random.normal(k_bc, (num_classes,), dtype=jnp.float32) * 0.02

    params = prepare_params(w_enc, w_cls, b_cls, f_tile=f_tile)
    logits = sign_language_classifier_forward(images, params)
    logits = jax.block_until_ready(logits)
    assert logits.shape == (B, num_classes)

    ref = _reference(images, w_enc, w_cls, b_cls)
    assert jnp.allclose(logits, ref, atol=1e-2, rtol=1e-2), \
        float(jnp.max(jnp.abs(logits - ref)))

    ref32 = _reference_f32(images, w_enc, w_cls, b_cls)
    assert jnp.allclose(logits, ref32, atol=5e-2, rtol=5e-2), \
        float(jnp.max(jnp.abs(logits - ref32)))


if __name__ == "__main__":
    key = jax.random.PRNGKey(0)
    k1, k2 = jax.random.split(key, 2)

    # Case 1: small shapes consistent with the forward (NCHW images, CLIP visual
    # output_dim D, num_classes NC). f_tile=256 exercises the K-grid (4 steps).
    _run_case(k1, B=2, C=4, H=16, W=16, output_dim=32, num_classes=8, f_tile=256)

    # Case 2: exercises the megacore D-split path (single batch block, D_pad=256
    # -> two parallel d-blocks) plus 2 K steps.
    _run_case(k2, B=4, C=3, H=8, W=8, output_dim=256, num_classes=10, f_tile=128)

    print("KERNEL_OK")
</pallas_src>

<mosaic_0001>
module attributes {stable_mosaic.version = 11 : i64} {
  func.func @_encode_kernel(%arg0: i32, %arg1: i32, %arg2: i32, %arg3: memref<16x256xbf16, #tpu.memory_space<vmem>>, %arg4: memref<256x128xbf16, #tpu.memory_space<vmem>>, %arg5: memref<16x128xf32, #tpu.memory_space<vmem>>) attributes {dimension_semantics = [#tpu.dimension_semantics<parallel>, #tpu.dimension_semantics<parallel>, #tpu.dimension_semantics<arbitrary>], iteration_bounds = array<i64: 1, 1, 4>, scalar_prefetch = 0 : i64, scratch_operands = 0 : i64, tpu.core_type = #tpu.core_type<tc>, window_params = [{transform_indices = @transform_0, window_bounds = array<i64: 16, 256>}, {transform_indices = @transform_1, window_bounds = array<i64: 256, 128>}, {transform_indices = @transform_2, window_bounds = array<i64: 16, 128>}]} {
    %c0_i32 = arith.constant 0 : i32
    %0 = arith.cmpi eq, %arg2, %c0_i32 : i32
    %1 = arith.extui %0 : i1 to i32
    %c0_i32_0 = arith.constant 0 : i32
    %2 = arith.cmpi ne, %1, %c0_i32_0 : i32
    scf.if %2 {
      %cst_8 = arith.constant 0.000000e+00 : f32
      %9 = vector.broadcast %cst_8 : f32 to vector<16x128xf32>
      %c0_9 = arith.constant 0 : index
      %c0_10 = arith.constant 0 : index
      %10 = vector.load %arg5[%c0_9, %c0_10] : memref<16x128xf32, #tpu.memory_space<vmem>>, vector<16x128xf32>
      tpu.vector_store %arg5[%c0_9, %c0_10], %9 {strides = array<i32>} : memref<16x128xf32, #tpu.memory_space<vmem>>, vector<16x128xf32>,
    } else {
    }
    %c0 = arith.constant 0 : index
    %c0_1 = arith.constant 0 : index
    %3 = vector.load %arg5[%c0, %c0_1] : memref<16x128xf32, #tpu.memory_space<vmem>>, vector<16x128xf32>
    %c0_2 = arith.constant 0 : index
    %c0_3 = arith.constant 0 : index
    %4 = vector.load %arg3[%c0_2, %c0_3] : memref<16x256xbf16, #tpu.memory_space<vmem>>, vector<16x256xbf16>
    %c0_4 = arith.constant 0 : index
    %c0_5 = arith.constant 0 : index
    %5 = vector.load %arg4[%c0_4, %c0_5] : memref<256x128xbf16, #tpu.memory_space<vmem>>, vector<256x128xbf16>
    %cst = arith.constant dense<0.000000e+00> : vector<16x128xf32>
    %6 = tpu.matmul %4, %5, %cst {dimension_numbers = #tpu.dot_dimension_numbers<[1], [0], [0], [1], [0, 0, 1, 1], [], []>} : vector<16x256xbf16>, vector<256x128xbf16>, vector<16x128xf32> -> vector<16x128xf32>
    %7 = arith.addf %3, %6 : vector<16x128xf32>
    %c0_6 = arith.constant 0 : index
    %c0_7 = arith.constant 0 : index
    %8 = vector.load %arg5[%c0_6, %c0_7] : memref<16x128xf32, #tpu.memory_space<vmem>>, vector<16x128xf32>
    tpu.vector_store %arg5[%c0_6, %c0_7], %7 {strides = array<i32>} : memref<16x128xf32, #tpu.memory_space<vmem>>, vector<16x128xf32>,
    return
  }
  func.func @transform_0(%arg0: i32, %arg1: i32, %arg2: i32) -> (i32, i32) {
    %c0_i32 = arith.constant 0 : i32
    return %arg1, %arg2 : i32, i32
  }
  func.func @transform_1(%arg0: i32, %arg1: i32, %arg2: i32) -> (i32, i32) {
    %c0_i32 = arith.constant 0 : i32
    return %arg2, %arg0 : i32, i32
  }
  func.func @transform_2(%arg0: i32, %arg1: i32, %arg2: i32) -> (i32, i32) {
    %c0_i32 = arith.constant 0 : i32
    return %arg1, %arg0 : i32, i32
  }
}

</mosaic_0001>

<llo_original>
// kernel: tpu_custom_call.1
$region0: #{tpu_custom_call.1}
  #allocation0 [shape = 'u32[]', space=smem, size = 0x4, offset = 0x4, fixed_abs, tag = 'smem constant byte address 0x4 - core index']
  #allocation1 [shape = 'u32[144,128]{1,0:T(1,128)}', space=vmem, size = 0x12000, scoped, tag = 'internal scratch']
  %s0 = inlined_call_operand.hbm [shape: bf16[16,1024], index: 0, kind: input, shape index: {}]
  %s1 = inlined_call_operand.hbm [shape: bf16[1024,128], index: 1, kind: input, shape index: {}]
  %s2 = inlined_call_operand.hbm [shape: f32[16,128], index: 2, kind: output, shape index: {}]
  %s3 = sld [smem:[#allocation0]]
  $region53: #{tpu_custom_call.1} parent=0
    _
  %s5 = ssub.s32 1, %s3
  %s6 = scalar_select 0, %s5, %s3
  $region1: #{tpu_custom_call.1} parent=0
    #allocation2 [shape = 'u8[16384]{0}', space=vmem, size = 0x4000, scoped, tag = 'input window, operand 0']
    #allocation3 [shape = 's32[2]{0}', space=sflag, size = 0x8, scoped, tag = 'scoped memory for tpu_custom_call.1']
    #allocation4 [shape = 's32[2]{0}', space=sflag, size = 0x8, scoped, tag = 'scoped memory for tpu_custom_call.1']
    #allocation5 [shape = 'u8[131072]{0}', space=vmem, size = 0x20000, scoped, tag = 'input window, operand 1']
    #allocation6 [shape = 's32[2]{0}', space=sflag, size = 0x8, scoped, tag = 'scoped memory for tpu_custom_call.1']
    #allocation7 [shape = 'u8[8192]{0}', space=vmem, size = 0x2000, scoped, tag = 'output window, operand 0, single buffered']
    %7 = vsyncpa [#allocation3], 0
    %s8 = scalar_lea.sflag [#allocation3], 1
    %9 = vsyncpa %s8, 0
    %10 = vsyncpa [#allocation6], 0
    %s11 = scalar_lea.sflag [#allocation6], 1
    %12 = vsyncpa %s11, 0
    %13 = vsyncpa [#allocation4], 0
    loop: start=0, step=1, limit=6
    $region2: #{tpu_custom_call.1} parent=1 // loop_pre_header
      _
    $region3: #{tpu_custom_call.1} parent=1 // loop_header
      %s15 = sphi 0, %s19
      %p16 = scmp.ge.s32.totalorder %s15, 6
      %s22 = sphi 0, %s41
      %s23 = sphi 0, %s37
      %s24 = sphi 0, %s33
      %s25 = sphi 0, %s22
      %s26 = sphi 0, %s23
      %s27 = sphi 0, %s24
      %s28 = sphi 0, %s25
      %s29 = sphi 0, %s26
      %s30 = sphi 0, %s27
      %s46 = sphi 0, %s48
      %s49 = sphi 0, %s46
      %s50 = sphi 0, %s49
      %s66 = sphi 0, %s50
      %s74 = sphi 0, %s76
      %s77 = sphi 0, %s74
      %s78 = sphi 0, %s77
      %s94 = sphi 0, %s78
      %s102 = sphi 0, %s104
      %s105 = sphi 0, %s102
      %s106 = sphi 0, %s105
      %s122 = sphi 0, %s106
    $region4: #{tpu_custom_call.1} parent=1 // loop_header_branch
      %18 = sbr.rel (%p16) target = $region8
    $region5: #{tpu_custom_call.1} parent=1 // loop_body
      %s20 = ssub.s32 %s15, 1
      %s21 = ssub.s32 %s15, 2
      %s31 = sadd.s32 1, %s24
      %p32 = scmp.ge.s32.totalorder %s31, 4
      %s33 = scalar_select %p32, 0, %s31
      %s34 = sadd.s32 1, %s23
      %s35 = scalar_select %p32, %s34, %s23
      %p36 = scmp.ge.s32.totalorder %s35, 1
      %s37 = scalar_select %p36, 0, %s35
      %s38 = sadd.s32 1, %s22
      %s39 = scalar_select %p36, %s38, %s22
      %p40 = scmp.ge.s32.totalorder %s39, 1
      %s41 = scalar_select %p40, 0, %s39
      %s42 = ssub.s32 %s23, %s37
      %s43 = ssub.s32 %s24, %s33
      %s44 = sor.u32 %s42, %s43
      %p45 = scmp.eq.s32.totalorder %s44, 0
      %s47 = sadd.s32 %s46, 1
      %s48 = scalar_select %p45, %s46, %s47
      %p51 = pneg %p45
      %p52 = scmp.eq.s32.totalorder %s15, 3
      %p53 = por %p51, %p52
      %p54 = scmp.ne.s32.totalorder %s46, %s49
      %p55 = scmp.eq.s32.totalorder %s15, 0
      %p56 = por %p54, %p55
      %p57 = scmp.ne.s32.totalorder %s46, %s49
      %p58 = scmp.eq.s32.totalorder %s20, 3
      %p59 = por %p57, %p58
      %p60 = scmp.ne.s32.totalorder %s49, %s50
      %p61 = scmp.eq.s32.totalorder %s20, 0
      %p62 = por %p60, %p61
      %p63 = scmp.ne.s32.totalorder %s49, %s50
      %p64 = scmp.eq.s32.totalorder %s21, 3
      %p65 = por %p63, %p64
      %p67 = scmp.ne.s32.totalorder %s50, %s66
      %p68 = scmp.eq.s32.totalorder %s21, 0
      %p69 = por %p67, %p68
      %s70 = ssub.s32 %s24, %s33
      %s71 = ssub.s32 %s22, %s41
      %s72 = sor.u32 %s70, %s71
      %p73 = scmp.eq.s32.totalorder %s72, 0
      %s75 = sadd.s32 %s74, 1
      %s76 = scalar_select %p73, %s74, %s75
      %p79 = pneg %p73
      %p80 = scmp.eq.s32.totalorder %s15, 3
      %p81 = por %p79, %p80
      %p82 = scmp.ne.s32.totalorder %s74, %s77
      %p83 = scmp.eq.s32.totalorder %s15, 0
      %p84 = por %p82, %p83
      %p85 = scmp.ne.s32.totalorder %s74, %s77
      %p86 = scmp.eq.s32.totalorder %s20, 3
      %p87 = por %p85, %p86
      %p88 = scmp.ne.s32.totalorder %s77, %s78
      %p89 = scmp.eq.s32.totalorder %s20, 0
      %p90 = por %p88, %p89
      %p91 = scmp.ne.s32.totalorder %s77, %s78
      %p92 = scmp.eq.s32.totalorder %s21, 3
      %p93 = por %p91, %p92
      %p95 = scmp.ne.s32.totalorder %s78, %s94
      %p96 = scmp.eq.s32.totalorder %s21, 0
      %p97 = por %p95, %p96
      %s98 = ssub.s32 %s23, %s37
      %s99 = ssub.s32 %s22, %s41
      %s100 = sor.u32 %s98, %s99
      %p101 = scmp.eq.s32.totalorder %s100, 0
      %s103 = sadd.s32 %s102, 1
      %s104 = scalar_select %p101, %s102, %s103
      %p107 = pneg %p101
      %p108 = scmp.eq.s32.totalorder %s15, 3
      %p109 = por %p107, %p108
      %p110 = scmp.ne.s32.totalorder %s102, %s105
      %p111 = scmp.eq.s32.totalorder %s15, 0
      %p112 = por %p110, %p111
      %p113 = scmp.ne.s32.totalorder %s102, %s105
      %p114 = scmp.eq.s32.totalorder %s20, 3
      %p115 = por %p113, %p114
      %p116 = scmp.ne.s32.totalorder %s105, %s106
      %p117 = scmp.eq.s32.totalorder %s20, 0
      %p118 = por %p116, %p117
      %p119 = scmp.ne.s32.totalorder %s105, %s106
      %p120 = scmp.eq.s32.totalorder %s21, 3
      %p121 = por %p119, %p120
      %p123 = scmp.ne.s32.totalorder %s106, %s122
      %p124 = scmp.eq.s32.totalorder %s21, 0
      %p125 = por %p123, %p124
      %p126 = scmp.le.s32.totalorder 1, %s15
      %p127 = scmp.lt.s32.totalorder %s15, 5
      %p128 = pnand %p126, %p127
      %p129 = pneg %p128
      // Predicated region
      $region9: #{tpu_custom_call.1} parent=5 // pred_check
        _
      $region10: #{tpu_custom_call.1} parent=5 // pred_check_branch
        %131 = sbr.rel (%p128) target = $region12
      $region11: #{tpu_custom_call.1} parent=5 // pred_region
        %s132 = ssub.s32 %s15, 1
      $region12: #{tpu_custom_call.1} parent=5 // pred_fallthru
        _
      %p133 = scmp.lt.s32.totalorder %s15, 4
      // Predicated region
      $region13: #{tpu_custom_call.1} parent=5 // pred_check
        %p134 = pneg %p133
      $region14: #{tpu_custom_call.1} parent=5 // pred_check_branch
        %136 = sbr.rel (%p134) target = $region16
      $region15: #{tpu_custom_call.1} parent=5 // pred_region
        // Predicated region
        $region17: #{tpu_custom_call.1} parent=15 // pred_check
          %p137 = pneg %p56
        $region18: #{tpu_custom_call.1} parent=15 // pred_check_branch
          %139 = sbr.rel (%p137) target = $region20
        $region19: #{tpu_custom_call.1} parent=15 // pred_region
          %s140 = sand.u32 %s46, 1
          %s141 = scalar_lea.sflag [#allocation3], %s140
          %s142 = sand.u32 %s46, 1
          %s143 = smul.addr %s142, 16
          %s144 = scalar_lea.vmem [#allocation2], %s143
          %s145 = smul.u32 2, %s23
          %s146 = smul.u32 2, %s24
          %s148 = ssub.s32 256, 256
          %149 = vsyncadd %s141, %s148
          %s150 = smul.addr %s145, 8
          %s151 = sadd.s32 %s146, %s150
          %s152 = smul.addr %s151, 64
          %s153 = scalar_lea.hbm %s0, %s152
          %s154 = sshll.u32 %s144, 4
          %s155 = int_to_ptr.vmem [resolvable:$true] %s154
          %160 = dma.hbm_to_vmem [thread:$0]  %s153, 256, %s155, %s141, 512, 128, 8
        $region20: #{tpu_custom_call.1} parent=15 // pred_fallthru
          _
        // Predicated region
        $region21: #{tpu_custom_call.1} parent=15 // pred_check
          %p161 = pneg %p84
        $region22: #{tpu_custom_call.1} parent=15 // pred_check_branch
          %163 = sbr.rel (%p161) target = $region24
        $region23: #{tpu_custom_call.1} parent=15 // pred_region
          %s164 = sand.u32 %s74, 1
          %s165 = scalar_lea.sflag [#allocation6], %s164
          %s166 = sand.u32 %s74, 1
          %s167 = smul.addr %s166, 128
          %s168 = scalar_lea.vmem [#allocation5], %s167
          %s169 = smul.u32 32, %s24
          %s171 = ssub.s32 2048, 2048
          %172 = vsyncadd %s165, %s171
          %s173 = sadd.s32 %s22, %s169
          %s174 = smul.addr %s173, 64
          %s175 = scalar_lea.hbm %s1, %s174
          %s176 = sshll.u32 %s168, 4
          %s177 = int_to_ptr.vmem [resolvable:$true] %s176
          %182 = dma.hbm_to_vmem [thread:$0]  %s175, 2048, %s177, %s165, 64, 64, 4
        $region24: #{tpu_custom_call.1} parent=15 // pred_fallthru
          _
      $region16: #{tpu_custom_call.1} parent=5 // pred_fallthru
        _
      %p183 = scmp.le.s32.totalorder 1, %s15
      %p184 = scmp.lt.s32.totalorder %s15, 5
      %p185 = pnand %p183, %p184
      %p186 = pneg %p185
      // Predicated region
      $region25: #{tpu_custom_call.1} parent=5 // pred_check
        _
      $region26: #{tpu_custom_call.1} parent=5 // pred_check_branch
        %188 = sbr.rel (%p185) target = $region28
      $region27: #{tpu_custom_call.1} parent=5 // pred_region
        %s189 = ssub.s32 %s15, 1
        %s190 = sand.u32 %s49, 1
        %s191 = scalar_lea.sflag [#allocation3], %s190
        %s192 = sand.u32 %s49, 1
        %s193 = smul.addr %s192, 16
        %s194 = scalar_lea.vmem [#allocation2], %s193
        // Predicated region
        $region29: #{tpu_custom_call.1} parent=27 // pred_check
          %p195 = pneg %p62
        $region30: #{tpu_custom_call.1} parent=27 // pred_check_branch
          %197 = sbr.rel (%p195) target = $region32
        $region31: #{tpu_custom_call.1} parent=27 // pred_region
          %198 = dma.done %s191, 256
        $region32: #{tpu_custom_call.1} parent=27 // pred_fallthru
          _
        %s199 = sand.u32 %s77, 1
        %s200 = scalar_lea.sflag [#allocation6], %s199
        %s201 = sand.u32 %s77, 1
        %s202 = smul.addr %s201, 128
        %s203 = scalar_lea.vmem [#allocation5], %s202
        // Predicated region
        $region33: #{tpu_custom_call.1} parent=27 // pred_check
          %p204 = pneg %p90
        $region34: #{tpu_custom_call.1} parent=27 // pred_check_branch
          %206 = sbr.rel (%p204) target = $region36
        $region35: #{tpu_custom_call.1} parent=27 // pred_region
          %207 = dma.done %s200, 2048
        $region36: #{tpu_custom_call.1} parent=27 // pred_fallthru
          _
        %s208 = sand.u32 %s49, 1
        %s209 = scalar_lea.sflag [#allocation3], %s208
        %s210 = sand.u32 %s49, 1
        %s211 = smul.addr %s210, 16
        %s212 = scalar_lea.vmem [#allocation2], %s211
        %p213 = pneg %p62
        %p214 = pneg %p59
        %s215 = sand.u32 %s77, 1
        %s216 = scalar_lea.sflag [#allocation6], %s215
        %s217 = sand.u32 %s77, 1
        %s218 = smul.addr %s217, 128
        %s219 = scalar_lea.vmem [#allocation5], %s218
        %p220 = pneg %p90
        %p221 = pneg %p87
        %p222 = pneg %p118
        %p223 = pneg %p115
        %s224 = smul.u32 2, %s26
        %s225 = smul.u32 2, %s27
        %s226 = smul.u32 32, %s27
        %s227 = smul.u32 2, %s26
        %p229 = scmp.eq.s32.totalorder %s27, 0
        // Predicated region
        $region37: #{tpu_custom_call.1} parent=27 // pred_check
          %p230 = pneg %p229
        $region38: #{tpu_custom_call.1} parent=27 // pred_check_branch
          %232 = sbr.rel (%p230) target = $region40
        $region39: #{tpu_custom_call.1} parent=27 // pred_region
          %233 = vst [vmem:[#allocation7] sm:$0xff] 0.0
          %234 = vst [vmem:[#allocation7 + $0x8] sm:$0xff] 0.0
        $region40: #{tpu_custom_call.1} parent=27 // pred_fallthru
          _
        %v235 = vld [vmem:[#allocation7] sm:$0xff]
        %v236 = vld [vmem:[#allocation7 + $0x8] sm:$0xff]
        %v237 = vld [vmem:[%s194] sm:$0xff]
        %v238 = vld [vmem:[%s194 + $0x8] sm:$0xff]
        %v239 = vld [vmem:[%s203] sm:$0xf]
        %v240 = vld [vmem:[%s203 + $0x4] sm:$0xf]
        %v241 = vld [vmem:[%s203 + $0x8] sm:$0xf]
        %v242 = vld [vmem:[%s203 + $0xc] sm:$0xf]
        %v243 = vld [vmem:[%s203 + $0x10] sm:$0xf]
        %v244 = vld [vmem:[%s203 + $0x14] sm:$0xf]
        %v245 = vld [vmem:[%s203 + $0x18] sm:$0xf]
        %v246 = vld [vmem:[%s203 + $0x1c] sm:$0xf]
        %v247 = vld [vmem:[%s203 + $0x20] sm:$0xf]
        %v248 = vld [vmem:[%s203 + $0x24] sm:$0xf]
        %v249 = vld [vmem:[%s203 + $0x28] sm:$0xf]
        %v250 = vld [vmem:[%s203 + $0x2c] sm:$0xf]
        %v251 = vld [vmem:[%s203 + $0x30] sm:$0xf]
        %v252 = vld [vmem:[%s203 + $0x34] sm:$0xf]
        %v253 = vld [vmem:[%s203 + $0x38] sm:$0xf]
        %v254 = vld [vmem:[%s203 + $0x3c] sm:$0xf]
        %v255 = vld [vmem:[%s203 + $0x40] sm:$0xf]
        %v256 = vld [vmem:[%s203 + $0x44] sm:$0xf]
        %v257 = vld [vmem:[%s203 + $0x48] sm:$0xf]
        %v258 = vld [vmem:[%s203 + $0x4c] sm:$0xf]
        %v259 = vld [vmem:[%s203 + $0x50] sm:$0xf]
        %v260 = vld [vmem:[%s203 + $0x54] sm:$0xf]
        %v261 = vld [vmem:[%s203 + $0x58] sm:$0xf]
        %v262 = vld [vmem:[%s203 + $0x5c] sm:$0xf]
        %v263 = vld [vmem:[%s203 + $0x60] sm:$0xf]
        %v264 = vld [vmem:[%s203 + $0x64] sm:$0xf]
        %v265 = vld [vmem:[%s203 + $0x68] sm:$0xf]
        %v266 = vld [vmem:[%s203 + $0x6c] sm:$0xf]
        %v267 = vld [vmem:[%s203 + $0x70] sm:$0xf]
        %v268 = vld [vmem:[%s203 + $0x74] sm:$0xf]
        %v269 = vld [vmem:[%s203 + $0x78] sm:$0xf]
        %v270 = vld [vmem:[%s203 + $0x7c] sm:$0xf]
        %v273 = vunpack.c.l.b16 %v237
        %v274 = vunpack.c.h.b16 %v237
        %v275 = vunpack.c.l.b16 %v238
        %v276 = vunpack.c.h.b16 %v238
        %v277 = vpack.c.b16 %v275, %v273
        %v278 = vpack.c.b16 %v276, %v274
        %v313 = vunpack.c.l.b16 %v239
        %v314 = vunpack.c.l.b16 %v240
        %v315 = vunpack.c.l.b16 %v241
        %v316 = vunpack.c.l.b16 %v242
        %v317 = vunpack.c.l.b16 %v243
        %v318 = vunpack.c.l.b16 %v244
        %v319 = vunpack.c.l.b16 %v245
        %v320 = vunpack.c.l.b16 %v246
        %v321 = vunpack.c.l.b16 %v247
        %v322 = vunpack.c.l.b16 %v248
        %v323 = vunpack.c.l.b16 %v249
        %v324 = vunpack.c.l.b16 %v250
        %v325 = vunpack.c.l.b16 %v251
        %v326 = vunpack.c.l.b16 %v252
        %v327 = vunpack.c.l.b16 %v253
        %v328 = vunpack.c.l.b16 %v254
        %v329 = vunpack.c.l.b16 %v255
        %v330 = vunpack.c.l.b16 %v256
        %v331 = vunpack.c.l.b16 %v257
        %v332 = vunpack.c.l.b16 %v258
        %v333 = vunpack.c.l.b16 %v259
        %v334 = vunpack.c.l.b16 %v260
        %v335 = vunpack.c.l.b16 %v261
        %v336 = vunpack.c.l.b16 %v262
        %v337 = vunpack.c.l.b16 %v263
        %v338 = vunpack.c.l.b16 %v264
        %v339 = vunpack.c.l.b16 %v265
        %v340 = vunpack.c.l.b16 %v266
        %v341 = vunpack.c.l.b16 %v267
        %v342 = vunpack.c.l.b16 %v268
        %v343 = vunpack.c.l.b16 %v269
        %v344 = vunpack.c.l.b16 %v270
        %v345 = vpack.c.b16 %v314, %v313
        %v346 = vpack.c.b16 %v316, %v315
        %v347 = vpack.c.b16 %v318, %v317
        %v348 = vpack.c.b16 %v320, %v319
        %v349 = vpack.c.b16 %v322, %v321
        %v350 = vpack.c.b16 %v324, %v323
        %v351 = vpack.c.b16 %v326, %v325
        %v352 = vpack.c.b16 %v328, %v327
        %v353 = vpack.c.b16 %v330, %v329
        %v354 = vpack.c.b16 %v332, %v331
        %v355 = vpack.c.b16 %v334, %v333
        %v356 = vpack.c.b16 %v336, %v335
        %v357 = vpack.c.b16 %v338, %v337
        %v358 = vpack.c.b16 %v340, %v339
        %v359 = vpack.c.b16 %v342, %v341
        %v360 = vpack.c.b16 %v344, %v343
        %377 = vmatprep.subr.bf16.mxu0 0
        %378 = vmatpush1.bf16.msra.mxu0 %v345
        %379 = vmatprep.subr.bf16.mxu0 0
        %380 = vmatpush1.bf16.msra.mxu0 %v346
        %381 = vmatprep.subr.bf16.mxu0 0
        %382 = vmatpush1.bf16.msra.mxu0 %v347
        %383 = vmatprep.subr.bf16.mxu0 0
        %384 = vmatpush1.bf16.msra.mxu0 %v348
        %385 = vmatprep.subr.bf16.mxu0 0
        %386 = vmatpush1.bf16.msra.mxu0 %v349
        %387 = vmatprep.subr.bf16.mxu0 0
        %388 = vmatpush1.bf16.msra.mxu0 %v350
        %389 = vmatprep.subr.bf16.mxu0 0
        %390 = vmatpush1.bf16.msra.mxu0 %v351
        %391 = vmatprep.subr.bf16.mxu0 0
        %392 = vmatpush1.bf16.msra.mxu0 %v352
        %393 = vmatprep.subr.bf16.mxu0 0
        %394 = vmatpush1.bf16.msra.mxu0 %v353
        %395 = vmatprep.subr.bf16.mxu0 0
        %396 = vmatpush1.bf16.msra.mxu0 %v354
        %397 = vmatprep.subr.bf16.mxu0 0
        %398 = vmatpush1.bf16.msra.mxu0 %v355
        %399 = vmatprep.subr.bf16.mxu0 0
        %400 = vmatpush1.bf16.msra.mxu0 %v356
        %401 = vmatprep.subr.bf16.mxu0 0
        %402 = vmatpush1.bf16.msra.mxu0 %v357
        %403 = vmatprep.subr.bf16.mxu0 0
        %404 = vmatpush1.bf16.msra.mxu0 %v358
        %405 = vmatprep.subr.bf16.mxu0 0
        %406 = vmatpush1.bf16.msra.mxu0 %v359
        %407 = vmatprep.subr.bf16.mxu0 0
        %408 = vmatpush1.bf16.msra.mxu0 %v360
        %409 = vmatprep.mubr.bf16.mxu0 %v278
        %410 = vmatmul.mubr.bf16.gmra.mrb[0].mxu0 %v277
        %v411 = vpop.f32.mrb[0].mxu0
        %v412 = vadd.f32 0.0, %v411
        %v413 = vpop.f32.mrb[0].mxu0
        %v414 = vpop.f32.mrb[0].mxu0
        %v415 = vadd.f32 0.0, %v414
        %v416 = vpop.f32.mrb[0].mxu0
        %417 = vdwg.mxu0
        %v418 = vadd.f32 %v235, %v412
        %v419 = vadd.f32 %v236, %v415
        %420 = vst [vmem:[#allocation7] sm:$0xff] %v418
        %421 = vst [vmem:[#allocation7 + $0x8] sm:$0xff] %v419
        // Predicated region
        $region41: #{tpu_custom_call.1} parent=27 // pred_check
          %p422 = pneg %p115
        $region42: #{tpu_custom_call.1} parent=27 // pred_check_branch
          %424 = sbr.rel (%p422) target = $region44
        $region43: #{tpu_custom_call.1} parent=27 // pred_region
          %s425 = smul.u32 2, %s26
          %s427 = ssub.s32 256, 256
          %428 = vsyncadd [#allocation4], %s427
          %s429 = sadd.s32 %s25, %s425
          %s430 = smul.addr %s429, 128
          %s431 = scalar_lea.hbm %s2, %s430
          %s432 = sshll.u32 [#allocation7], 4
          %s433 = int_to_ptr.vmem [resolvable:$true] %s432
          %438 = dma.vmem_to_hbm [thread:$0]  %s433, 256, %s431, [#allocation4], 128, 128, 8
        $region44: #{tpu_custom_call.1} parent=27 // pred_fallthru
          _
        // Predicated region
        $region45: #{tpu_custom_call.1} parent=27 // pred_check
          %p439 = pneg %p115
        $region46: #{tpu_custom_call.1} parent=27 // pred_check_branch
          %441 = sbr.rel (%p439) target = $region48
        $region47: #{tpu_custom_call.1} parent=27 // pred_region
          %442 = dma.done [#allocation4], 256
        $region48: #{tpu_custom_call.1} parent=27 // pred_fallthru
          _
      $region28: #{tpu_custom_call.1} parent=5 // pred_fallthru
        _
      %p443 = scmp.le.s32.totalorder 2, %s15
      // Predicated region
      $region49: #{tpu_custom_call.1} parent=5 // pred_check
        %p444 = pneg %p443
      $region50: #{tpu_custom_call.1} parent=5 // pred_check_branch
        %446 = sbr.rel (%p444) target = $region52
      $region51: #{tpu_custom_call.1} parent=5 // pred_region
        %s447 = ssub.s32 %s15, 2
      $region52: #{tpu_custom_call.1} parent=5 // pred_fallthru
        _
    $region6: #{tpu_custom_call.1} parent=1 // loop_footer
      %s19 = sadd.s32 1, %s15
    $region7: #{tpu_custom_call.1} parent=1 // loop_footer_branch
      %14 = sbr.rel target = $region3
    $region8: #{tpu_custom_call.1} parent=1 // loop_exit
      _
    %448 = vsyncpa [#allocation3], 1
    %s449 = scalar_lea.sflag [#allocation3], 1
    %450 = vsyncpa %s449, 1
    %451 = vsyncpa [#allocation6], 1
    %s452 = scalar_lea.sflag [#allocation6], 1
    %453 = vsyncpa %s452, 1
    %454 = vsyncpa [#allocation4], 1
    %s455 = scalar_lea.sflag [#allocation4], 1
    %456 = vsyncpa %s455, 1

</llo_original>
